<compile_context>
chip_gen: v5e
topology: v5e:2x2
jax: 0.10.0
libtpu: 0.0.40
codegen_flags: <defaults>
</compile_context>

<pallas_src>
import functools

import jax
import jax.numpy as jnp
import numpy as np
from jax.experimental import pallas as pl
from jax.experimental.pallas import tpu as pltpu


def _round_up(x, m):
    return ((x + m - 1) // m) * m


def _powi(x, g):
    """x ** g for a non-negative integer g via repeated multiply (stays on VPU)."""
    g = int(g)
    if g == 0:
        return jnp.ones_like(x)
    acc = x
    for _ in range(g - 1):
        acc = acc * x
    return acc


def _sublane_unit(dtype):
    """Packed sublane tile height: 8 for 32-bit, 16 for 16-bit, 32 for 8-bit."""
    itemsize = jnp.dtype(dtype).itemsize
    return max(8, 32 // max(itemsize, 1))


def _vmem_capacity_bytes():
    """Best-effort physical VMEM query (v5e/v6e: 128 MiB, v7x: 64 MiB)."""
    try:
        info = pltpu.get_tpu_info()
        for name in ("vmem_capacity_bytes", "vmem_bytes", "vmem_size_bytes"):
            v = getattr(info, name, None)
            if v:
                return int(v)
    except Exception:
        pass
    try:
        kind = jax.devices()[0].device_kind.lower()
        if "v7" in kind:
            return 64 * 1024 * 1024
    except Exception:
        pass
    return 128 * 1024 * 1024


def _dice_focal_kernel(x_ref, t_ref, dice_ref, focal_ref,
                       inter_acc, sums_acc, focal_acc, *,
                       gamma, smooth, lane_block, valid_cols):
    j = pl.program_id(1)

    # Reset the per-row partial sums at the start of each lane sweep.
    @pl.when(j == 0)
    def _():
        inter_acc[...] = jnp.zeros_like(inter_acc)
        sums_acc[...] = jnp.zeros_like(sums_acc)
        focal_acc[...] = jnp.zeros_like(focal_acc)

    x = x_ref[...].astype(jnp.float32)   # (row_block, lane_block) logits
    t = t_ref[...].astype(jnp.float32)   # (row_block, lane_block) targets

    # One EUP transcendental per element (tanh) instead of exp + reciprocal.
    s = 0.5 * jnp.tanh(0.5 * x) + 0.5

    st = s * t                            # dice intersection term
    spt = s + t                           # dice union term (single add)
    # p_t = t*s + (1-t)*(1-s) == 1 - (s+t) + 2*s*t  -> reuse st / spt.
    p_t = 1.0 - spt + 2.0 * st
    one_m = 1.0 - p_t
    if float(gamma) == int(gamma):
        w = _powi(one_m, gamma)           # integer gamma -> VPU multiplies
    else:
        w = one_m ** gamma                # non-integer gamma -> EUP pow
    focal = -w * jnp.log(p_t + smooth)

    if valid_cols is not None:
        # L was padded up to a multiple of lane_block: padded logits/targets are
        # zero, so sigmoid(0)=0.5 would pollute the union and focal sums.  The
        # intersection (s*t) needs no mask because padded targets are 0.
        col = j * lane_block + jax.lax.broadcasted_iota(
            jnp.int32, (x.shape[0], lane_block), 1)
        valid = col < valid_cols
        spt = jnp.where(valid, spt, 0.0)
        focal = jnp.where(valid, focal, 0.0)

    # Fold lane_block -> 128 lanes with plain full-vreg VPU adds (static,
    # lane-tile-aligned slices = vreg selection, no data movement).  The
    # cross-lane XLU reduce and the narrow (width-1) store happen only once,
    # in the epilogue below — not on every grid step.
    k = lane_block // 128

    def fold_lanes(v):
        out = v[:, 0:128]
        for c in range(1, k):
            out = out + v[:, c * 128:(c + 1) * 128]
        return out

    inter_acc[...] += fold_lanes(st)
    sums_acc[...] += fold_lanes(spt)
    focal_acc[...] += fold_lanes(focal)

    # Finalize this row block on the last lane step.
    @pl.when(j == pl.num_programs(1) - 1)
    def _():
        inter = jnp.sum(inter_acc[...], axis=1, keepdims=True)
        union = jnp.sum(sums_acc[...], axis=1, keepdims=True)
        dice_ref[...] = (2.0 * inter + smooth) / (union + smooth)
        focal_ref[...] = jnp.sum(focal_acc[...], axis=1, keepdims=True)


def dice_focal_loss(inputs, targets, *, dice_weight=0.5, focal_weight=0.5,
                    gamma=2, smooth=1e-5, row_block=None, lane_block=None):
    """inputs/targets: (N, C, H, W) arrays (NCHW). Returns scalar f32 loss."""
    N, C, H, W = inputs.shape
    R, L = N * C, H * W

    # Sublane tile of the *narrowest* input dtype so bf16/int8 sources load
    # unmasked (the kernel upcasts to f32 internally).
    unit = max(_sublane_unit(inputs.dtype), _sublane_unit(targets.dtype))

    # Generation-aware budgets.  Per-input block element cap (x4 B once f32):
    #   v7x     : 512Ki elems -> 2 MiB/block (2 in x 2 buf = 8 MiB, 64 MiB VMEM)
    #   v5e/v6e :   1Mi elems -> 4 MiB/block (2 in x 2 buf = 16 MiB, 128 MiB VMEM)
    is_v7x = _vmem_capacity_bytes() <= 64 * 1024 * 1024
    elem_cap = (512 * 1024) if is_v7x else (1024 * 1024)
    vmem_limit = (32 if is_v7x else 64) * 1024 * 1024

    if lane_block is None:
        lane_cap = max(128, (elem_cap // unit) // 128 * 128)
        lane_block = min(_round_up(L, 128), lane_cap)
    L_pad = _round_up(L, lane_block)

    if row_block is None:
        row_target = max(unit, (elem_cap // lane_block) // unit * unit)
        if R >= 2 * unit:
            # Keep >= 2 row blocks so both v7x TensorCores get work on the
            # "parallel" axis; tile growth goes to lane_block, not row_block.
            half = max(unit, (_round_up(R, unit) // 2) // unit * unit)
            row_target = min(row_target, half)
        row_block = min(_round_up(R, unit), row_target)
    R_pad = _round_up(R, row_block)

    x2 = inputs.reshape(R, L)
    t2 = targets.reshape(R, L)
    if R_pad != R or L_pad != L:
        # Pad to the block grid; padded lanes are masked in-kernel, padded rows
        # are sliced off the per-row outputs below.
        x2 = jnp.pad(x2, ((0, R_pad - R), (0, L_pad - L)))
        t2 = jnp.pad(t2, ((0, R_pad - R), (0, L_pad - L)))

    grid = (R_pad // row_block, L_pad // lane_block)

    kernel = functools.partial(
        _dice_focal_kernel,
        gamma=gamma,
        smooth=float(smooth),
        lane_block=lane_block,
        valid_cols=(L if L_pad != L else None),
    )

    dice_rows, focal_rows = pl.pallas_call(
        kernel,
        out_shape=(
            jax.ShapeDtypeStruct((R_pad, 1), jnp.float32),   # per-row dice score
            jax.ShapeDtypeStruct((R_pad, 1), jnp.float32),   # per-row focal sum
        ),
        grid_spec=pltpu.PrefetchScalarGridSpec(
            num_scalar_prefetch=0,
            grid=grid,
            in_specs=[
                pl.BlockSpec((row_block, lane_block), lambda i, j: (i, j)),
                pl.BlockSpec((row_block, lane_block), lambda i, j: (i, j)),
            ],
            out_specs=[
                pl.BlockSpec((row_block, 1), lambda i, j: (i, 0)),
                pl.BlockSpec((row_block, 1), lambda i, j: (i, 0)),
            ],
            scratch_shapes=[
                pltpu.VMEM((row_block, 128), jnp.float32),  # intersection lane-partials
                pltpu.VMEM((row_block, 128), jnp.float32),  # sigmoid+target lane-partials
                pltpu.VMEM((row_block, 128), jnp.float32),  # focal lane-partials
            ],
        ),
        compiler_params=pltpu.CompilerParams(
            # Row axis is independent per block -> megacore-shardable on v7x;
            # lane axis carries the running reductions -> arbitrary.
            dimension_semantics=("parallel", "arbitrary"),
            vmem_limit_bytes=vmem_limit,
        ),
    )(x2, t2)

    # Drop padded rows; tiny finalize in plain JAX (f32 tree reductions).
    dice_rows = dice_rows[:R, 0]
    focal_rows = focal_rows[:R, 0]
    dice_loss = 1.0 - jnp.mean(dice_rows)
    focal_loss = jnp.sum(focal_rows) / float(R * L)
    return dice_weight * dice_loss + focal_weight * focal_loss


def _reference(inputs, targets, dice_weight=0.5, focal_weight=0.5,
               gamma=2, smooth=1e-5):
    s = jax.nn.sigmoid(inputs.astype(jnp.float32))
    t = targets.astype(jnp.float32)
    inter = jnp.sum(s * t, axis=(2, 3))
    union = jnp.sum(s, axis=(2, 3)) + jnp.sum(t, axis=(2, 3))
    dice = (2.0 * inter + smooth) / (union + smooth)
    dice_loss = 1.0 - dice.mean()
    p_t = t * s + (1.0 - t) * (1.0 - s)
    focal = -((1.0 - p_t) ** gamma) * jnp.log(p_t + smooth)
    return dice_weight * dice_loss + focal_weight * focal.mean()


if __name__ == "__main__":
    key = jax.random.PRNGKey(0)
    k1, k2 = jax.random.split(key)

    N, C, H, W = 2, 4, 16, 16
    inputs = jax.random.normal(k1, (N, C, H, W), dtype=jnp.float32)
    targets = jax.random.bernoulli(k2, 0.5, (N, C, H, W)).astype(jnp.float32)

    loss = dice_focal_loss(inputs, targets)
    loss = jax.block_until_ready(loss)

    ref = jax.block_until_ready(_reference(inputs, targets))
    assert np.allclose(float(loss), float(ref), rtol=1e-5, atol=1e-6), (
        float(loss), float(ref))

    print("KERNEL_OK")
</pallas_src>

<mosaic_0001>
module attributes {stable_mosaic.version = 11 : i64} {
  func.func @_dice_focal_kernel(%arg0: i32, %arg1: i32, %arg2: memref<8x256xf32, #tpu.memory_space<vmem>>, %arg3: memref<8x256xf32, #tpu.memory_space<vmem>>, %arg4: memref<8x1xf32, #tpu.memory_space<vmem>>, %arg5: memref<8x1xf32, #tpu.memory_space<vmem>>, %arg6: memref<8x128xf32, #tpu.memory_space<vmem>>, %arg7: memref<8x128xf32, #tpu.memory_space<vmem>>, %arg8: memref<8x128xf32, #tpu.memory_space<vmem>>) attributes {dimension_semantics = [#tpu.dimension_semantics<parallel>, #tpu.dimension_semantics<arbitrary>], iteration_bounds = array<i64: 1, 1>, scalar_prefetch = 0 : i64, scratch_operands = 3 : i64, tpu.core_type = #tpu.core_type<tc>, window_params = [{transform_indices = @transform_0, window_bounds = array<i64: 8, 256>}, {transform_indices = @transform_1, window_bounds = array<i64: 8, 256>}, {transform_indices = @transform_2, window_bounds = array<i64: 8, 1>}, {transform_indices = @transform_3, window_bounds = array<i64: 8, 1>}]} {
    %c0_i32 = arith.constant 0 : i32
    %0 = arith.cmpi eq, %arg1, %c0_i32 : i32
    %1 = arith.extui %0 : i1 to i32
    %c0_i32_0 = arith.constant 0 : i32
    %2 = arith.cmpi ne, %1, %c0_i32_0 : i32
    scf.if %2 {
      %cst_25 = arith.constant 0.000000e+00 : f32
      %49 = vector.broadcast %cst_25 : f32 to vector<8x128xf32>
      %c0_26 = arith.constant 0 : index
      %c0_27 = arith.constant 0 : index
      %50 = vector.load %arg6[%c0_26, %c0_27] : memref<8x128xf32, #tpu.memory_space<vmem>>, vector<8x128xf32>
      tpu.vector_store %arg6[%c0_26, %c0_27], %49 {strides = array<i32>} : memref<8x128xf32, #tpu.memory_space<vmem>>, vector<8x128xf32>,
      %cst_28 = arith.constant 0.000000e+00 : f32
      %51 = vector.broadcast %cst_28 : f32 to vector<8x128xf32>
      %c0_29 = arith.constant 0 : index
      %c0_30 = arith.constant 0 : index
      %52 = vector.load %arg7[%c0_29, %c0_30] : memref<8x128xf32, #tpu.memory_space<vmem>>, vector<8x128xf32>
      tpu.vector_store %arg7[%c0_29, %c0_30], %51 {strides = array<i32>} : memref<8x128xf32, #tpu.memory_space<vmem>>, vector<8x128xf32>,
      %cst_31 = arith.constant 0.000000e+00 : f32
      %53 = vector.broadcast %cst_31 : f32 to vector<8x128xf32>
      %c0_32 = arith.constant 0 : index
      %c0_33 = arith.constant 0 : index
      %54 = vector.load %arg8[%c0_32, %c0_33] : memref<8x128xf32, #tpu.memory_space<vmem>>, vector<8x128xf32>
      tpu.vector_store %arg8[%c0_32, %c0_33], %53 {strides = array<i32>} : memref<8x128xf32, #tpu.memory_space<vmem>>, vector<8x128xf32>,
    } else {
    }
    %c0 = arith.constant 0 : index
    %c0_1 = arith.constant 0 : index
    %3 = vector.load %arg2[%c0, %c0_1] : memref<8x256xf32, #tpu.memory_space<vmem>>, vector<8x256xf32>
    %c0_2 = arith.constant 0 : index
    %c0_3 = arith.constant 0 : index
    %4 = vector.load %arg3[%c0_2, %c0_3] : memref<8x256xf32, #tpu.memory_space<vmem>>, vector<8x256xf32>
    %cst = arith.constant 5.000000e-01 : f32
    %5 = vector.broadcast %cst : f32 to vector<8x256xf32>
    %6 = arith.mulf %5, %3 : vector<8x256xf32>
    %7 = math.tanh %6 : vector<8x256xf32>
    %cst_4 = arith.constant 5.000000e-01 : f32
    %8 = vector.broadcast %cst_4 : f32 to vector<8x256xf32>
    %9 = arith.mulf %8, %7 : vector<8x256xf32>
    %cst_5 = arith.constant 5.000000e-01 : f32
    %10 = vector.broadcast %cst_5 : f32 to vector<8x256xf32>
    %11 = arith.addf %9, %10 : vector<8x256xf32>
    %12 = arith.mulf %11, %4 : vector<8x256xf32>
    %13 = arith.addf %11, %4 : vector<8x256xf32>
    %cst_6 = arith.constant 1.000000e+00 : f32
    %14 = vector.broadcast %cst_6 : f32 to vector<8x256xf32>
    %15 = arith.subf %14, %13 : vector<8x256xf32>
    %cst_7 = arith.constant 2.000000e+00 : f32
    %16 = vector.broadcast %cst_7 : f32 to vector<8x256xf32>
    %17 = arith.mulf %16, %12 : vector<8x256xf32>
    %18 = arith.addf %15, %17 : vector<8x256xf32>
    %cst_8 = arith.constant 1.000000e+00 : f32
    %19 = vector.broadcast %cst_8 : f32 to vector<8x256xf32>
    %20 = arith.subf %19, %18 : vector<8x256xf32>
    %21 = arith.mulf %20, %20 : vector<8x256xf32>
    %cst_9 = arith.constant 0.000000e+00 : f32
    %22 = vector.broadcast %cst_9 : f32 to vector<8x256xf32>
    %23 = arith.subf %22, %21 : vector<8x256xf32>
    %cst_10 = arith.constant 9.99999974E-6 : f32
    %24 = vector.broadcast %cst_10 : f32 to vector<8x256xf32>
    %25 = arith.addf %18, %24 : vector<8x256xf32>
    %26 = math.log %25 : vector<8x256xf32>
    %27 = arith.mulf %23, %26 : vector<8x256xf32>
    %c0_11 = arith.constant 0 : index
    %c0_12 = arith.constant 0 : index
    %28 = vector.load %arg6[%c0_11, %c0_12] : memref<8x128xf32, #tpu.memory_space<vmem>>, vector<8x128xf32>
    %29 = vector.extract_strided_slice %12 {offsets = [0, 0], sizes = [8, 128], strides = [1, 1]} : vector<8x256xf32> to vector<8x128xf32>
    %30 = vector.extract_strided_slice %12 {offsets = [0, 128], sizes = [8, 128], strides = [1, 1]} : vector<8x256xf32> to vector<8x128xf32>
    %31 = arith.addf %29, %30 : vector<8x128xf32>
    %32 = arith.addf %28, %31 : vector<8x128xf32>
    %c0_13 = arith.constant 0 : index
    %c0_14 = arith.constant 0 : index
    %33 = vector.load %arg6[%c0_13, %c0_14] : memref<8x128xf32, #tpu.memory_space<vmem>>, vector<8x128xf32>
    tpu.vector_store %arg6[%c0_13, %c0_14], %32 {strides = array<i32>} : memref<8x128xf32, #tpu.memory_space<vmem>>, vector<8x128xf32>,
    %c0_15 = arith.constant 0 : index
    %c0_16 = arith.constant 0 : index
    %34 = vector.load %arg7[%c0_15, %c0_16] : memref<8x128xf32, #tpu.memory_space<vmem>>, vector<8x128xf32>
    %35 = vector.extract_strided_slice %13 {offsets = [0, 0], sizes = [8, 128], strides = [1, 1]} : vector<8x256xf32> to vector<8x128xf32>
    %36 = vector.extract_strided_slice %13 {offsets = [0, 128], sizes = [8, 128], strides = [1, 1]} : vector<8x256xf32> to vector<8x128xf32>
    %37 = arith.addf %35, %36 : vector<8x128xf32>
    %38 = arith.addf %34, %37 : vector<8x128xf32>
    %c0_17 = arith.constant 0 : index
    %c0_18 = arith.constant 0 : index
    %39 = vector.load %arg7[%c0_17, %c0_18] : memref<8x128xf32, #tpu.memory_space<vmem>>, vector<8x128xf32>
    tpu.vector_store %arg7[%c0_17, %c0_18], %38 {strides = array<i32>} : memref<8x128xf32, #tpu.memory_space<vmem>>, vector<8x128xf32>,
    %c0_19 = arith.constant 0 : index
    %c0_20 = arith.constant 0 : index
    %40 = vector.load %arg8[%c0_19, %c0_20] : memref<8x128xf32, #tpu.memory_space<vmem>>, vector<8x128xf32>
    %41 = vector.extract_strided_slice %27 {offsets = [0, 0], sizes = [8, 128], strides = [1, 1]} : vector<8x256xf32> to vector<8x128xf32>
    %42 = vector.extract_strided_slice %27 {offsets = [0, 128], sizes = [8, 128], strides = [1, 1]} : vector<8x256xf32> to vector<8x128xf32>
    %43 = arith.addf %41, %42 : vector<8x128xf32>
    %44 = arith.addf %40, %43 : vector<8x128xf32>
    %c0_21 = arith.constant 0 : index
    %c0_22 = arith.constant 0 : index
    %45 = vector.load %arg8[%c0_21, %c0_22] : memref<8x128xf32, #tpu.memory_space<vmem>>, vector<8x128xf32>
    tpu.vector_store %arg8[%c0_21, %c0_22], %44 {strides = array<i32>} : memref<8x128xf32, #tpu.memory_space<vmem>>, vector<8x128xf32>,
    %c0_i32_23 = arith.constant 0 : i32
    %46 = arith.cmpi eq, %arg1, %c0_i32_23 : i32
    %47 = arith.extui %46 : i1 to i32
    %c0_i32_24 = arith.constant 0 : i32
    %48 = arith.cmpi ne, %47, %c0_i32_24 : i32
    scf.if %48 {
      %c0_25 = arith.constant 0 : index
      %c0_26 = arith.constant 0 : index
      %49 = vector.load %arg6[%c0_25, %c0_26] : memref<8x128xf32, #tpu.memory_space<vmem>>, vector<8x128xf32>
      %cst_27 = arith.constant dense<0.000000e+00> : vector<8xf32>
      %50 = vector.multi_reduction <add>, %49, %cst_27 [1] : vector<8x128xf32> to vector<8xf32>
      %51 = vector.shape_cast %50 : vector<8xf32> to vector<8x1xf32>
      %c0_28 = arith.constant 0 : index
      %c0_29 = arith.constant 0 : index
      %52 = vector.load %arg7[%c0_28, %c0_29] : memref<8x128xf32, #tpu.memory_space<vmem>>, vector<8x128xf32>
      %cst_30 = arith.constant dense<0.000000e+00> : vector<8xf32>
      %53 = vector.multi_reduction <add>, %52, %cst_30 [1] : vector<8x128xf32> to vector<8xf32>
      %54 = vector.shape_cast %53 : vector<8xf32> to vector<8x1xf32>
      %cst_31 = arith.constant 2.000000e+00 : f32
      %55 = vector.broadcast %cst_31 : f32 to vector<8x1xf32>
      %56 = arith.mulf %55, %51 : vector<8x1xf32>
      %cst_32 = arith.constant 9.99999974E-6 : f32
      %57 = vector.broadcast %cst_32 : f32 to vector<8x1xf32>
      %58 = arith.addf %56, %57 : vector<8x1xf32>
      %cst_33 = arith.constant 9.99999974E-6 : f32
      %59 = vector.broadcast %cst_33 : f32 to vector<8x1xf32>
      %60 = arith.addf %54, %59 : vector<8x1xf32>
      %61 = arith.divf %58, %60 : vector<8x1xf32>
      %c0_34 = arith.constant 0 : index
      %c0_35 = arith.constant 0 : index
      %62 = vector.load %arg4[%c0_34, %c0_35] : memref<8x1xf32, #tpu.memory_space<vmem>>, vector<8x1xf32>
      tpu.vector_store %arg4[%c0_34, %c0_35], %61 {strides = array<i32>} : memref<8x1xf32, #tpu.memory_space<vmem>>, vector<8x1xf32>,
      %c0_36 = arith.constant 0 : index
      %c0_37 = arith.constant 0 : index
      %63 = vector.load %arg8[%c0_36, %c0_37] : memref<8x128xf32, #tpu.memory_space<vmem>>, vector<8x128xf32>
      %cst_38 = arith.constant dense<0.000000e+00> : vector<8xf32>
      %64 = vector.multi_reduction <add>, %63, %cst_38 [1] : vector<8x128xf32> to vector<8xf32>
      %65 = vector.shape_cast %64 : vector<8xf32> to vector<8x1xf32>
      %c0_39 = arith.constant 0 : index
      %c0_40 = arith.constant 0 : index
      %66 = vector.load %arg5[%c0_39, %c0_40] : memref<8x1xf32, #tpu.memory_space<vmem>>, vector<8x1xf32>
      tpu.vector_store %arg5[%c0_39, %c0_40], %65 {strides = array<i32>} : memref<8x1xf32, #tpu.memory_space<vmem>>, vector<8x1xf32>,
    } else {
    }
    return
  }
  func.func @transform_0(%arg0: i32, %arg1: i32) -> (i32, i32) {
    %c0_i32 = arith.constant 0 : i32
    return %arg0, %arg1 : i32, i32
  }
  func.func @transform_1(%arg0: i32, %arg1: i32) -> (i32, i32) {
    %c0_i32 = arith.constant 0 : i32
    return %arg0, %arg1 : i32, i32
  }
  func.func @transform_2(%arg0: i32, %arg1: i32) -> (i32, i32) {
    %c0_i32 = arith.constant 0 : i32
    %c0_i32_0 = arith.constant 0 : i32
    return %arg0, %c0_i32 : i32, i32
  }
  func.func @transform_3(%arg0: i32, %arg1: i32) -> (i32, i32) {
    %c0_i32 = arith.constant 0 : i32
    %c0_i32_0 = arith.constant 0 : i32
    return %arg0, %c0_i32 : i32, i32
  }
}

</mosaic_0001>

<llo_original>
// kernel: tpu_custom_call.1
$region0: #{tpu_custom_call.1}
  #allocation0 [shape = 'u32[]', space=smem, size = 0x4, offset = 0x4, fixed_abs, tag = 'smem constant byte address 0x4 - core index']
  #allocation1 [shape = 'u32[72,128]{1,0:T(1,128)}', space=vmem, size = 0x9000, scoped, tag = 'internal scratch']
  #allocation2 [shape = 'f32[8,128]{1,0:T(8,128)}', space=vmem, size = 0x1000, scoped, tag = 'scratch operand']
  #allocation3 [shape = 'f32[8,128]{1,0:T(8,128)}', space=vmem, size = 0x1000, scoped, tag = 'scratch operand']
  #allocation4 [shape = 'f32[8,128]{1,0:T(8,128)}', space=vmem, size = 0x1000, scoped, tag = 'scratch operand']
  %s0 = inlined_call_operand.hbm [shape: f32[8,256], index: 0, kind: input, shape index: {}]
  %s1 = inlined_call_operand.hbm [shape: f32[8,256], index: 1, kind: input, shape index: {}]
  %s2 = inlined_call_operand.vmem [shape: f32[8,1], index: 2, kind: output, shape index: {0}]
  %s3 = inlined_call_operand.vmem [shape: f32[8,1], index: 3, kind: output, shape index: {1}]
  %4 = xla_tuple %s2, %s3
  %s5 = sld [smem:[#allocation0]]
  $region42: #{tpu_custom_call.1} parent=0
    _
  %s7 = ssub.s32 1, %s5
  %s8 = scalar_select 0, %s7, %s5
  $region1: #{tpu_custom_call.1} parent=0
    #allocation5 [shape = 'u8[8192]{0}', space=vmem, size = 0x2000, scoped, tag = 'input window, operand 0, single buffered']
    #allocation6 [shape = 's32[1]{0}', space=sflag, size = 0x4, scoped, tag = 'scoped memory for tpu_custom_call.1']
    #allocation7 [shape = 'u8[8192]{0}', space=vmem, size = 0x2000, scoped, tag = 'input window, operand 1, single buffered']
    #allocation8 [shape = 's32[1]{0}', space=sflag, size = 0x4, scoped, tag = 'scoped memory for tpu_custom_call.1']
    %9 = vsyncpa [#allocation6], 0
    %10 = vsyncpa [#allocation8], 0
    // Predicated region
    $region2: #{tpu_custom_call.1} parent=1 // pred_check
      _
    $region3: #{tpu_custom_call.1} parent=1 // pred_check_branch
      %12 = sbr.rel (0) target = $region5
    $region4: #{tpu_custom_call.1} parent=1 // pred_region
      %14 = vsyncadd [#allocation6], 0
      %s16 = sshll.u32 %s0, 4
      %s17 = int_to_ptr.hbm [resolvable:$true] %s16
      %s18 = sshll.u32 [#allocation5], 4
      %s19 = int_to_ptr.vmem [resolvable:$true] %s18
      %21 = dma.hbm_to_vmem [thread:$0]  %s17, 256, %s19, [#allocation6]
    $region5: #{tpu_custom_call.1} parent=1 // pred_fallthru
      _
    // Predicated region
    $region6: #{tpu_custom_call.1} parent=1 // pred_check
      _
    $region7: #{tpu_custom_call.1} parent=1 // pred_check_branch
      %23 = sbr.rel (0) target = $region9
    $region8: #{tpu_custom_call.1} parent=1 // pred_region
      %25 = vsyncadd [#allocation8], 0
      %s27 = sshll.u32 %s1, 4
      %s28 = int_to_ptr.hbm [resolvable:$true] %s27
      %s29 = sshll.u32 [#allocation7], 4
      %s30 = int_to_ptr.vmem [resolvable:$true] %s29
      %32 = dma.hbm_to_vmem [thread:$0]  %s28, 256, %s30, [#allocation8]
    $region9: #{tpu_custom_call.1} parent=1 // pred_fallthru
      _
    // Predicated region
    $region10: #{tpu_custom_call.1} parent=1 // pred_check
      _
    $region11: #{tpu_custom_call.1} parent=1 // pred_check_branch
      %34 = sbr.rel (0) target = $region13
    $region12: #{tpu_custom_call.1} parent=1 // pred_region
      %36 = dma.done [#allocation6], 256
    $region13: #{tpu_custom_call.1} parent=1 // pred_fallthru
      _
    // Predicated region
    $region14: #{tpu_custom_call.1} parent=1 // pred_check
      _
    $region15: #{tpu_custom_call.1} parent=1 // pred_check_branch
      %38 = sbr.rel (0) target = $region17
    $region16: #{tpu_custom_call.1} parent=1 // pred_region
      %40 = dma.done [#allocation8], 256
    $region17: #{tpu_custom_call.1} parent=1 // pred_fallthru
      _
    %p41 = scmp.eq.s32.totalorder 0, 0
    // Predicated region
    $region18: #{tpu_custom_call.1} parent=1 // pred_check
      %p42 = pneg %p41
    $region19: #{tpu_custom_call.1} parent=1 // pred_check_branch
      %44 = sbr.rel (%p42) target = $region21
    $region20: #{tpu_custom_call.1} parent=1 // pred_region
      %45 = vst [vmem:[#allocation2] sm:$0xff] 0.0
      %46 = vst [vmem:[#allocation3] sm:$0xff] 0.0
      %47 = vst [vmem:[#allocation4] sm:$0xff] 0.0
    $region21: #{tpu_custom_call.1} parent=1 // pred_fallthru
      _
    %v48 = vld [vmem:[#allocation5] sm:$0xff]
    %v49 = vld [vmem:[#allocation5 + $0x8] sm:$0xff]
    %v50 = vld [vmem:[#allocation7] sm:$0xff]
    %v51 = vld [vmem:[#allocation7 + $0x8] sm:$0xff]
    %v52 = vmul.f32 %v48, 0.5
    %v53 = vmul.f32 %v49, 0.5
    %v54 = vtanh.pop %v52
    %v55 = vtanh.pop %v53
    %v56 = vmul.f32 %v54, 0.5
    %v57 = vmul.f32 %v55, 0.5
    %v58 = vadd.f32 %v56, 0.5
    %v59 = vadd.f32 %v57, 0.5
    %v60 = vmul.f32 %v58, %v50
    %v61 = vmul.f32 %v59, %v51
    %v62 = vadd.f32 %v58, %v50
    %v63 = vadd.f32 %v59, %v51
    %v64 = vsub.f32 1.0, %v62
    %v65 = vsub.f32 1.0, %v63
    %v66 = vmul.f32 %v60, 2.0
    %v67 = vmul.f32 %v61, 2.0
    %v68 = vadd.f32 %v64, %v66
    %v69 = vadd.f32 %v65, %v67
    %v70 = vsub.f32 1.0, %v68
    %v71 = vsub.f32 1.0, %v69
    %v72 = vmul.f32 %v70, %v70
    %v73 = vmul.f32 %v71, %v71
    %v74 = vsub.f32 0.0, %v72
    %v75 = vsub.f32 0.0, %v73
    %v76 = vadd.f32 %v68, 1e-05
    %v77 = vadd.f32 %v69, 1e-05
    %v78 = vlog2.pop %v76
    %v79 = vmul.f32 %v78, 0.6931472
    %v80 = vlog2.pop %v77
    %v81 = vmul.f32 %v80, 0.6931472
    %v82 = vmul.f32 %v74, %v79
    %v83 = vmul.f32 %v75, %v81
    %v84 = vld [vmem:[#allocation2] sm:$0xff]
    %v85 = vadd.f32 %v60, %v61
    %v86 = vadd.f32 %v84, %v85
    %87 = vst [vmem:[#allocation2] sm:$0xff] %v86
    %v88 = vld [vmem:[#allocation3] sm:$0xff]
    %v89 = vadd.f32 %v62, %v63
    %v90 = vadd.f32 %v88, %v89
    %91 = vst [vmem:[#allocation3] sm:$0xff] %v90
    %v92 = vld [vmem:[#allocation4] sm:$0xff]
    %v93 = vadd.f32 %v82, %v83
    %v94 = vadd.f32 %v92, %v93
    %95 = vst [vmem:[#allocation4] sm:$0xff] %v94
    // Predicated region
    $region22: #{tpu_custom_call.1} parent=1 // pred_check
      %p96 = pneg %p41
    $region23: #{tpu_custom_call.1} parent=1 // pred_check_branch
      %98 = sbr.rel (%p96) target = $region25
    $region24: #{tpu_custom_call.1} parent=1 // pred_region
      %v99 = vld [vmem:[#allocation2] sm:$0xff]
      %100 = vadd.xlane.f32.xlu0 %v99
      %v101 = vpop.xlane.xlu0 %100
      %v102 = vld [vmem:[#allocation3] sm:$0xff]
      %103 = vadd.xlane.f32.xlu0 %v102
      %v104 = vpop.xlane.xlu0 %103
      %v105 = vmul.f32 %v101, 2.0
      %v106 = vadd.f32 %v105, 1e-05
      %v107 = vadd.f32 %v104, 1e-05
      %v108 = vrcp.pop %v107
      %v109 = vmul.f32 %v107, %v108
      %v110 = vsub.f32 1.0, %v109
      %v111 = vmul.f32 %v108, %v110
      %v112 = vadd.f32 %v108, %v111
      %vm113 = vweird.f32 %v107
      %vm114 = vweird.f32 %v108
      %vm115 = vmor %vm113, %vm114
      %v116 = vsel %vm115, %v108, %v112
      %v117 = vand.u32 2147483647, %v107
      %vm118 = vcmp.eq.f32.partialorder %v117, 8.507059e+37
      %v119 = vand.u32 %v107, 2147483648
      %v120 = vor.u32 1.1754944e-38, %v119
      %v121 = vsel %vm118, %v120, %v116
      %v122 = vmul.f32 %v106, %v121
      %vm123 = vcmask 7168
      %124 = vst.msk [vmem:[%s2] sm:$0xff] %vm123, %v122
      %v125 = vld [vmem:[#allocation4] sm:$0xff]
      %126 = vadd.xlane.f32.xlu0 %v125
      %v127 = vpop.xlane.xlu0 %126
      %128 = vst.msk [vmem:[%s3] sm:$0xff] %vm123, %v127
    $region25: #{tpu_custom_call.1} parent=1 // pred_fallthru
      _
    // Predicated region
    $region26: #{tpu_custom_call.1} parent=1 // pred_check
      _
    $region27: #{tpu_custom_call.1} parent=1 // pred_check_branch
      %130 = sbr.rel (0) target = $region29
    $region28: #{tpu_custom_call.1} parent=1 // pred_region
      _
    $region29: #{tpu_custom_call.1} parent=1 // pred_fallthru
      _
    // Predicated region
    $region30: #{tpu_custom_call.1} parent=1 // pred_check
      _
    $region31: #{tpu_custom_call.1} parent=1 // pred_check_branch
      %132 = sbr.rel (0) target = $region33
    $region32: #{tpu_custom_call.1} parent=1 // pred_region
      _
    $region33: #{tpu_custom_call.1} parent=1 // pred_fallthru
      _
    // Predicated region
    $region34: #{tpu_custom_call.1} parent=1 // pred_check
      _
    $region35: #{tpu_custom_call.1} parent=1 // pred_check_branch
      %134 = sbr.rel (0) target = $region37
    $region36: #{tpu_custom_call.1} parent=1 // pred_region
      _
    $region37: #{tpu_custom_call.1} parent=1 // pred_fallthru
      _
    // Predicated region
    $region38: #{tpu_custom_call.1} parent=1 // pred_check
      _
    $region39: #{tpu_custom_call.1} parent=1 // pred_check_branch
      %136 = sbr.rel (0) target = $region41
    $region40: #{tpu_custom_call.1} parent=1 // pred_region
      _
    $region41: #{tpu_custom_call.1} parent=1 // pred_fallthru
      _
    %137 = vsyncpa [#allocation6], 1
    %138 = vsyncpa [#allocation8], 1

</llo_original>
